<compile_context>
chip_gen: v7x
topology: tpu7x:2x2x1
jax: 0.10.0
libtpu: 0.0.40
codegen_flags: <defaults>
</compile_context>

<pallas_src>
import functools

import jax
import jax.numpy as jnp
from jax.experimental import pallas as pl
from jax.experimental.pallas import tpu as pltpu


def _default_act_dtype():
    """bf16 tanh/VPU path only on chips that have it (v6e/v7x); else f32."""
    try:
        info = pltpu.get_tpu_info()
        name = (str(getattr(info, "chip_version", "")) + " "
                + str(getattr(info, "version", "")) + " " + str(info)).lower()
        if ("v6" in name) or ("v7" in name):
            return jnp.bfloat16
    except Exception:
        pass
    return jnp.float32


def _pick_bt(B, Lp, E, D, A, elem_bytes, vmem_budget_bytes=24 << 20):
    """Largest batch tile (multiple of 8, divisor of B) that fits the budget."""
    if B <= 8:
        return B
    # Per-batch-row VMEM: double-buffered streamed blocks (ctx, s, out) plus
    # f32 intermediates (context_term, act, scores/p, block-diag rows).
    per_row = (2 * Lp * E + 2 * D) * elem_bytes + 2 * E * 4 \
              + (2 * Lp * A + 16 * Lp) * 4
    # Grid-invariant weights (Pallas still double-buffers these blocks).
    fixed = 2 * ((E + D) * A * elem_bytes + 3 * A * 4)
    cap = max(8, (vmem_budget_bytes - fixed) // max(per_row, 1))
    # Keep >= 2 grid steps (v7x dual-TC) and don't grow M past what overhead
    # amortization / MXU fill needs.
    cap = int(min(cap, max(8, B // 2), 512))
    best = None
    for d in range(8, cap + 1, 8):
        if B % d == 0:
            best = d
    if best is None:
        # No multiple-of-8 divisor <= cap: whole batch in one step keeps the
        # (8,128) block rule satisfied (block == full array dim).
        best = B
    return best


def sgm_attention_kernel(s_ref, ctx_ref, uwT_ref, wwT_ref, bias_v_ref, out_ref,
                         *, valid_len, act_dtype):
    # s_ref      : [bt, D]       decoder states for this batch tile (compute dtype)
    # ctx_ref    : [bt*Lp, E]    encoder context, flattened, Lp % 8 == 0
    # uwT_ref    : [E, A]        U weight, pre-transposed (compute dtype)
    # wwT_ref    : [D, A]        W weight, pre-transposed (compute dtype)
    # bias_v_ref : [3, A] f32    rows = [U bias; W bias; V weight]  (V bias dropped)
    # out_ref    : [bt, E]
    bt = s_ref.shape[0]
    n_rows, E = ctx_ref.shape
    Lp = n_rows // bt
    A = uwT_ref.shape[1]

    ub = bias_v_ref[0:1, :]                              # [1, A] f32
    wb = bias_v_ref[1:2, :]                              # [1, A] f32
    v = bias_v_ref[2:3, :]                               # [1, A] f32

    ctx = ctx_ref[...]                                   # [bt*Lp, E] compute dtype

    # Two big MXU projections for the whole tile (no M=1 matmuls), f32 accum.
    state_term = jnp.dot(s_ref[...], wwT_ref[...],
                         preferred_element_type=jnp.float32) + wb   # [bt, A]
    context_term = jnp.dot(ctx, uwT_ref[...],
                           preferred_element_type=jnp.float32) + ub  # [bt*Lp, A]

    # Tile-aligned reshape (Lp % 8 == 0) + broadcast add, then tanh in
    # act_dtype (bf16 on v6e/v7x: packed EUP/VPU; f32 on v5e).
    pre = context_term.reshape(bt, Lp, A) + state_term[:, None, :]   # f32
    act = jnp.tanh(pre.astype(act_dtype))                            # [bt, Lp, A]

    # Scores [bt, Lp]: multiply in act_dtype (VPU), reduce in f32 (XLU).
    prod = act * v.astype(act_dtype)[:, None, :]
    scores = jnp.sum(prod.astype(jnp.float32), axis=-1)              # [bt, Lp]

    # Mask padded context positions (softmax weight exactly 0 there).
    if valid_len < Lp:
        lane = jax.lax.broadcasted_iota(jnp.int32, scores.shape, 1)
        scores = jnp.where(lane < valid_len, scores, -1e30)

    # Numerically stable softmax along the lane axis, exact division.
    m = jnp.max(scores, axis=-1, keepdims=True)                      # [bt, 1]
    e = jnp.exp(scores - m)                                          # [bt, Lp]
    p = e / jnp.sum(e, axis=-1, keepdims=True)                       # [bt, Lp]

    # Weighted-context readout as block-diagonal MXU matmuls, chunked to at
    # most 8 rows so the redundant-MAC waste stays constant as bt grows:
    #   p_bd[r, r*Lp + l] = p[r, l];  c_t = p_bd @ ctx_chunk.
    rc = 8 if (bt % 8 == 0) else bt          # bt % rc == 0 by construction
    col = jax.lax.broadcasted_iota(jnp.int32, (rc, rc * Lp), 1)
    row = jax.lax.broadcasted_iota(jnp.int32, (rc, rc * Lp), 0)
    in_block = (col >= row * Lp) & (col < row * Lp + Lp)             # hoisted
    for c in range(bt // rc):
        r0 = c * rc
        p_c = p[r0:r0 + rc, :]                                       # [rc, Lp]
        p_bd = jnp.where(in_block, jnp.tile(p_c, (1, rc)), 0.0)      # [rc, rc*Lp]
        ctx_c = ctx[r0 * Lp:(r0 + rc) * Lp, :]                       # [rc*Lp, E]
        c_t = jnp.dot(p_bd.astype(ctx_c.dtype), ctx_c,
                      preferred_element_type=jnp.float32)            # [rc, E]
        out_ref[r0:r0 + rc, :] = c_t.astype(out_ref.dtype)


def sgm_attention(s, context, params, *, bt=None, compute_dtype=jnp.bfloat16,
                  act_dtype=None, vmem_limit_bytes=32 * 1024 * 1024):
    """s: [B, D], context: [B, L, E] -> c_t: [B, E] (dtype follows context)."""
    B, D = s.shape
    Bc, L, E = context.shape
    assert Bc == B
    uw, ub, ww, wb, vw, vb = params
    A = uw.shape[0]
    del vb  # constant on every score -> cancels in softmax -> no-op for c_t

    # Pad L to a multiple of 8 so the in-kernel sublane split is tile-aligned.
    Lp = -(-L // 8) * 8
    ctx_p = context if Lp == L else jnp.pad(context, ((0, 0), (0, Lp - L), (0, 0)))

    if act_dtype is None:
        act_dtype = _default_act_dtype()
    if bt is None:
        bt = _pick_bt(B, Lp, E, D, A, jnp.dtype(compute_dtype).itemsize)
    assert B % bt == 0, "batch must be divisible by the batch tile"

    # Wrapper-side layout plumbing (free): pre-transposed compute-dtype
    # weights, stacked f32 bias/V rows, flattened compute-dtype context.
    uwT = uw.T.astype(compute_dtype)                          # [E, A]
    wwT = ww.T.astype(compute_dtype)                          # [D, A]
    bias_v = jnp.stack([ub, wb, vw.reshape(-1)]).astype(jnp.float32)  # [3, A]
    s_c = s.astype(compute_dtype)                             # [B, D]
    ctx2d = ctx_p.reshape(B * Lp, E).astype(compute_dtype)    # [B*Lp, E]

    kernel = functools.partial(sgm_attention_kernel, valid_len=L,
                               act_dtype=act_dtype)

    return pl.pallas_call(
        kernel,
        out_shape=jax.ShapeDtypeStruct((B, E), context.dtype),
        grid=(B // bt,),
        in_specs=[
            pl.BlockSpec((bt, D), lambda b: (b, 0)),          # s
            pl.BlockSpec((bt * Lp, E), lambda b: (b, 0)),     # context (flat)
            pl.BlockSpec((E, A), lambda b: (0, 0)),           # U weight (pre-T)
            pl.BlockSpec((D, A), lambda b: (0, 0)),           # W weight (pre-T)
            pl.BlockSpec((3, A), lambda b: (0, 0)),           # [U bias; W bias; V]
        ],
        out_specs=pl.BlockSpec((bt, E), lambda b: (b, 0)),
        compiler_params=pltpu.CompilerParams(
            dimension_semantics=("parallel",),
            vmem_limit_bytes=vmem_limit_bytes),
    )(s_c, ctx2d, uwT, wwT, bias_v)


def sgm_attention_ref(s, context, params):
    """Pure-JAX reference mirroring the PyTorch forward."""
    uw, ub, ww, wb, vw, vb = params
    state_term = s @ ww.T + wb                       # [B, A]
    context_term = context @ uw.T + ub               # [B, L, A]
    act = jnp.tanh(context_term + state_term[:, None, :])
    weights = (act @ vw.T + vb)[..., 0]              # [B, L]
    p = jax.nn.softmax(weights, axis=-1)             # [B, L]
    return jnp.einsum("bl,ble->be", p, context)      # [B, E]


if __name__ == "__main__":
    # Small, deterministic shapes consistent with the module.
    B = 2            # batch
    L = 8            # encoder context length
    E = 32           # encoder_hidden_size
    D = 32           # decoder_hidden_size
    A = 32           # att_hidden_size

    key = jax.random.PRNGKey(0)
    k_ctx, k_s, k_uw, k_ub, k_ww, k_wb, k_vw, k_vb = jax.random.split(key, 8)

    context = jax.random.normal(k_ctx, (B, L, E), dtype=jnp.float32)
    s = jax.random.normal(k_s, (B, D), dtype=jnp.float32)

    uw = 0.1 * jax.random.normal(k_uw, (A, E), dtype=jnp.float32)
    ub = 0.1 * jax.random.normal(k_ub, (A,), dtype=jnp.float32)
    ww = 0.1 * jax.random.normal(k_ww, (A, D), dtype=jnp.float32)
    wb = 0.1 * jax.random.normal(k_wb, (A,), dtype=jnp.float32)
    vw = 0.1 * jax.random.normal(k_vw, (1, A), dtype=jnp.float32)
    vb = 0.1 * jax.random.normal(k_vb, (1,), dtype=jnp.float32)
    params = (uw, ub, ww, wb, vw, vb)

    c_ref = sgm_attention_ref(s, context, params)

    # Full-precision path: f32 operands and f32 activation math, exact softmax
    # division -> tight agreement with the f32 reference.
    c_f32 = jax.block_until_ready(
        sgm_attention(s, context, params,
                      compute_dtype=jnp.float32, act_dtype=jnp.float32))
    assert c_f32.shape == (B, E)
    assert jnp.allclose(c_f32, c_ref, atol=5e-3, rtol=5e-3)

    # Default (performance) path: bf16 matmul operands, chip-dependent
    # activation dtype, f32 accumulation/softmax.  bf16 context/weight rounding
    # bounds the deviation from the f32 reference at ~1e-2; any structural bug
    # would give O(1) errors.
    c_t = jax.block_until_ready(sgm_attention(s, context, params))
    assert c_t.shape == (B, E)
    assert jnp.allclose(c_t, c_ref, atol=5e-2, rtol=5e-2)

    print("KERNEL_OK")
</pallas_src>

<mosaic_0001>
module attributes {stable_mosaic.version = 11 : i64} {
  func.func @sgm_attention_kernel(%arg0: i32, %arg1: memref<2x32xf32, #tpu.memory_space<vmem>>, %arg2: memref<16x32xf32, #tpu.memory_space<vmem>>, %arg3: memref<32x32xf32, #tpu.memory_space<vmem>>, %arg4: memref<32x32xf32, #tpu.memory_space<vmem>>, %arg5: memref<3x32xf32, #tpu.memory_space<vmem>>, %arg6: memref<2x32xf32, #tpu.memory_space<vmem>>) attributes {dimension_semantics = [#tpu.dimension_semantics<parallel>], iteration_bounds = array<i64: 1>, scalar_prefetch = 0 : i64, scratch_operands = 0 : i64, tpu.core_type = #tpu.core_type<tc>, window_params = [{transform_indices = @transform_0, window_bounds = array<i64: 2, 32>}, {transform_indices = @transform_1, window_bounds = array<i64: 16, 32>}, {pipeline_mode = #tpu.pipeline_mode<synchronous>, transform_indices = @transform_2, window_bounds = array<i64: 32, 32>}, {pipeline_mode = #tpu.pipeline_mode<synchronous>, transform_indices = @transform_3, window_bounds = array<i64: 32, 32>}, {pipeline_mode = #tpu.pipeline_mode<synchronous>, transform_indices = @transform_4, window_bounds = array<i64: 3, 32>}, {transform_indices = @transform_5, window_bounds = array<i64: 2, 32>}]} {
    %c0 = arith.constant 0 : index
    %c0_0 = arith.constant 0 : index
    %0 = vector.load %arg5[%c0, %c0_0] : memref<3x32xf32, #tpu.memory_space<vmem>>, vector<1x32xf32>
    %c1 = arith.constant 1 : index
    %c0_1 = arith.constant 0 : index
    %1 = vector.load %arg5[%c1, %c0_1] : memref<3x32xf32, #tpu.memory_space<vmem>>, vector<1x32xf32>
    %c2 = arith.constant 2 : index
    %c0_2 = arith.constant 0 : index
    %2 = vector.load %arg5[%c2, %c0_2] : memref<3x32xf32, #tpu.memory_space<vmem>>, vector<1x32xf32>
    %c0_3 = arith.constant 0 : index
    %c0_4 = arith.constant 0 : index
    %3 = vector.load %arg2[%c0_3, %c0_4] : memref<16x32xf32, #tpu.memory_space<vmem>>, vector<16x32xf32>
    %c0_5 = arith.constant 0 : index
    %c0_6 = arith.constant 0 : index
    %4 = vector.load %arg1[%c0_5, %c0_6] : memref<2x32xf32, #tpu.memory_space<vmem>>, vector<2x32xf32>
    %c0_7 = arith.constant 0 : index
    %c0_8 = arith.constant 0 : index
    %5 = vector.load %arg4[%c0_7, %c0_8] : memref<32x32xf32, #tpu.memory_space<vmem>>, vector<32x32xf32>
    %cst = arith.constant dense<0.000000e+00> : vector<2x32xf32>
    %6 = tpu.matmul %4, %5, %cst {dimension_numbers = #tpu.dot_dimension_numbers<[1], [0], [0], [1], [0, 0, 1, 1], [], []>} : vector<2x32xf32>, vector<32x32xf32>, vector<2x32xf32> -> vector<2x32xf32>
    %7 = vector.broadcast %1 : vector<1x32xf32> to vector<2x32xf32>
    %8 = arith.addf %6, %7 : vector<2x32xf32>
    %c0_9 = arith.constant 0 : index
    %c0_10 = arith.constant 0 : index
    %9 = vector.load %arg3[%c0_9, %c0_10] : memref<32x32xf32, #tpu.memory_space<vmem>>, vector<32x32xf32>
    %cst_11 = arith.constant dense<0.000000e+00> : vector<16x32xf32>
    %10 = tpu.matmul %3, %9, %cst_11 {dimension_numbers = #tpu.dot_dimension_numbers<[1], [0], [0], [1], [0, 0, 1, 1], [], []>} : vector<16x32xf32>, vector<32x32xf32>, vector<16x32xf32> -> vector<16x32xf32>
    %11 = vector.broadcast %0 : vector<1x32xf32> to vector<16x32xf32>
    %12 = arith.addf %10, %11 : vector<16x32xf32>
    %13 = vector.shape_cast %12 : vector<16x32xf32> to vector<2x8x32xf32>
    %14 = vector.shape_cast %8 : vector<2x32xf32> to vector<2x1x32xf32>
    %15 = vector.broadcast %14 : vector<2x1x32xf32> to vector<2x8x32xf32>
    %16 = arith.addf %13, %15 : vector<2x8x32xf32>
    %17 = math.tanh %16 : vector<2x8x32xf32>
    %18 = vector.shape_cast %2 : vector<1x32xf32> to vector<1x1x32xf32>
    %19 = vector.broadcast %18 : vector<1x1x32xf32> to vector<2x8x32xf32>
    %20 = arith.mulf %17, %19 : vector<2x8x32xf32>
    %cst_12 = arith.constant dense<0.000000e+00> : vector<2x8xf32>
    %21 = vector.multi_reduction <add>, %20, %cst_12 [2] : vector<2x8x32xf32> to vector<2x8xf32>
    %cst_13 = arith.constant dense<0xFF800000> : vector<2xf32>
    %22 = vector.multi_reduction <maximumf>, %21, %cst_13 [1] : vector<2x8xf32> to vector<2xf32>
    %23 = vector.shape_cast %22 : vector<2xf32> to vector<2x1xf32>
    %24 = vector.broadcast %23 : vector<2x1xf32> to vector<2x8xf32>
    %25 = arith.subf %21, %24 : vector<2x8xf32>
    %26 = math.exp %25 : vector<2x8xf32>
    %cst_14 = arith.constant dense<0.000000e+00> : vector<2xf32>
    %27 = vector.multi_reduction <add>, %26, %cst_14 [1] : vector<2x8xf32> to vector<2xf32>
    %28 = vector.shape_cast %27 : vector<2xf32> to vector<2x1xf32>
    %29 = vector.broadcast %28 : vector<2x1xf32> to vector<2x8xf32>
    %30 = arith.divf %26, %29 : vector<2x8xf32>
    %31 = tpu.iota {dimensions = array<i32: 1>} : vector<2x16xi32>
    %32 = tpu.iota {dimensions = array<i32: 0>} : vector<2x16xi32>
    %c8_i32 = arith.constant 8 : i32
    %33 = vector.broadcast %c8_i32 : i32 to vector<2x16xi32>
    %34 = arith.muli %32, %33 : vector<2x16xi32>
    %35 = arith.cmpi sge, %31, %34 : vector<2x16xi32>
    %c8_i32_15 = arith.constant 8 : i32
    %36 = vector.broadcast %c8_i32_15 : i32 to vector<2x16xi32>
    %37 = arith.muli %32, %36 : vector<2x16xi32>
    %c8_i32_16 = arith.constant 8 : i32
    %38 = vector.broadcast %c8_i32_16 : i32 to vector<2x16xi32>
    %39 = arith.addi %37, %38 : vector<2x16xi32>
    %40 = arith.cmpi slt, %31, %39 : vector<2x16xi32>
    %41 = arith.andi %35, %40 : vector<2x16xi1>
    %42 = tpu.concatenate %30, %30 in 1 : vector<2x8xf32>, vector<2x8xf32> -> vector<2x16xf32>
    %cst_17 = arith.constant 0.000000e+00 : f32
    %43 = vector.broadcast %cst_17 : f32 to vector<2x16xf32>
    %44 = arith.select %41, %42, %43 : vector<2x16xi1>, vector<2x16xf32>
    %cst_18 = arith.constant dense<0.000000e+00> : vector<2x32xf32>
    %45 = tpu.matmul %44, %3, %cst_18 {dimension_numbers = #tpu.dot_dimension_numbers<[1], [0], [0], [1], [0, 0, 1, 1], [], []>} : vector<2x16xf32>, vector<16x32xf32>, vector<2x32xf32> -> vector<2x32xf32>
    %c0_19 = arith.constant 0 : index
    %c0_20 = arith.constant 0 : index
    %46 = vector.load %arg6[%c0_19, %c0_20] : memref<2x32xf32, #tpu.memory_space<vmem>>, vector<2x32xf32>
    tpu.vector_store %arg6[%c0_19, %c0_20], %45 {strides = array<i32>} : memref<2x32xf32, #tpu.memory_space<vmem>>, vector<2x32xf32>,
    return
  }
  func.func @transform_0(%arg0: i32) -> (i32, i32) {
    %c0_i32 = arith.constant 0 : i32
    %c0_i32_0 = arith.constant 0 : i32
    return %arg0, %c0_i32 : i32, i32
  }
  func.func @transform_1(%arg0: i32) -> (i32, i32) {
    %c0_i32 = arith.constant 0 : i32
    %c0_i32_0 = arith.constant 0 : i32
    return %arg0, %c0_i32 : i32, i32
  }
  func.func @transform_2(%arg0: i32) -> (i32, i32) {
    %c0_i32 = arith.constant 0 : i32
    %c0_i32_0 = arith.constant 0 : i32
    %c0_i32_1 = arith.constant 0 : i32
    return %c0_i32, %c0_i32_0 : i32, i32
  }
  func.func @transform_3(%arg0: i32) -> (i32, i32) {
    %c0_i32 = arith.constant 0 : i32
    %c0_i32_0 = arith.constant 0 : i32
    %c0_i32_1 = arith.constant 0 : i32
    return %c0_i32, %c0_i32_0 : i32, i32
  }
  func.func @transform_4(%arg0: i32) -> (i32, i32) {
    %c0_i32 = arith.constant 0 : i32
    %c0_i32_0 = arith.constant 0 : i32
    %c0_i32_1 = arith.constant 0 : i32
    return %c0_i32, %c0_i32_0 : i32, i32
  }
  func.func @transform_5(%arg0: i32) -> (i32, i32) {
    %c0_i32 = arith.constant 0 : i32
    %c0_i32_0 = arith.constant 0 : i32
    return %arg0, %c0_i32 : i32, i32
  }
}

</mosaic_0001>

<llo_original>
// kernel: tpu_custom_call.1
$region0: #{tpu_custom_call.1}
  #allocation0 [shape = 'u32[]', space=smem, size = 0x4, offset = 0x4, fixed_abs, tag = 'smem constant byte address 0x4 - core index']
  #allocation1 [shape = 'u32[144,128]{1,0:T(1,128)}', space=vmem, size = 0x12000, scoped, tag = 'internal scratch']
  %s0 = inlined_call_operand.hbm [shape: f32[2,32], index: 0, kind: input, shape index: {}]
  %s1 = inlined_call_operand.hbm [shape: f32[16,32], index: 1, kind: input, shape index: {}]
  %s2 = inlined_call_operand.hbm [shape: f32[32,32], index: 2, kind: input, shape index: {}]
  %s3 = inlined_call_operand.hbm [shape: f32[32,32], index: 3, kind: input, shape index: {}]
  %s4 = inlined_call_operand.vmem [shape: f32[3,32], index: 4, kind: input, shape index: {}]
  %s5 = inlined_call_operand.hbm [shape: f32[2,32], index: 5, kind: output, shape index: {}]
  %s6 = sld [smem:[#allocation0]]
  $region46: #{tpu_custom_call.1} parent=0
    _
  %s8 = ssub.s32 1, %s6
  %s9 = scalar_select 0, %s8, %s6
  $region1: #{tpu_custom_call.1} parent=0
    #allocation2 [shape = 'u8[1024]{0}', space=vmem, size = 0x400, scoped, tag = 'input window, operand 0, single buffered']
    #allocation3 [shape = 's32[1]{0}', space=sflag, size = 0x4, scoped, tag = 'scoped memory for tpu_custom_call.1']
    #allocation4 [shape = 's32[1]{0}', space=sflag, size = 0x4, scoped, tag = 'scoped memory for tpu_custom_call.1']
    #allocation5 [shape = 'u8[8192]{0}', space=vmem, size = 0x2000, scoped, tag = 'input window, operand 1, single buffered']
    #allocation6 [shape = 's32[1]{0}', space=sflag, size = 0x4, scoped, tag = 'scoped memory for tpu_custom_call.1']
    #allocation7 [shape = 'u8[16384]{0}', space=vmem, size = 0x4000, scoped, tag = 'input window, operand 2, single buffered']
    #allocation8 [shape = 'u8[16384]{0}', space=vmem, size = 0x4000, scoped, tag = 'input window, operand 3, single buffered']
    #allocation9 [shape = 's32[1]{0}', space=sflag, size = 0x4, scoped, tag = 'scoped memory for tpu_custom_call.1']
    #allocation10 [shape = 'u8[1024]{0}', space=vmem, size = 0x400, scoped, tag = 'output window, operand 0, single buffered']
    %10 = vsyncpa [#allocation3], 0
    %11 = vsyncpa [#allocation6], 0
    %12 = vsyncpa [#allocation9], 0
    %13 = vsyncpa [#allocation4], 0
    // Predicated region
    $region2: #{tpu_custom_call.1} parent=1 // pred_check
      _
    $region3: #{tpu_custom_call.1} parent=1 // pred_check_branch
      %15 = sbr.rel (0) target = $region5
    $region4: #{tpu_custom_call.1} parent=1 // pred_region
      %s17 = ssub.s32 32, 32
      %18 = vsyncadd [#allocation3], %s17
      %s20 = sshll.u32 [#allocation2], 4
      %s21 = int_to_ptr.vmem [resolvable:$true] %s20
      %23 = dma.hbm_to_vmem [thread:$0]  %s0, 32, %s21, [#allocation3]
    $region5: #{tpu_custom_call.1} parent=1 // pred_fallthru
      _
    // Predicated region
    $region6: #{tpu_custom_call.1} parent=1 // pred_check
      _
    $region7: #{tpu_custom_call.1} parent=1 // pred_check_branch
      %25 = sbr.rel (0) target = $region9
    $region8: #{tpu_custom_call.1} parent=1 // pred_region
      %s27 = ssub.s32 256, 256
      %28 = vsyncadd [#allocation6], %s27
      %s29 = sshll.u32 [#allocation5], 4
      %s30 = int_to_ptr.vmem [resolvable:$true] %s29
      %35 = dma.hbm_to_vmem [thread:$0]  %s1, 256, %s30, [#allocation6], 128, 128, 8
    $region9: #{tpu_custom_call.1} parent=1 // pred_fallthru
      _
    // Predicated region
    $region10: #{tpu_custom_call.1} parent=1 // pred_check
      _
    $region11: #{tpu_custom_call.1} parent=1 // pred_check_branch
      %37 = sbr.rel (0) target = $region13
    $region12: #{tpu_custom_call.1} parent=1 // pred_region
      %s39 = ssub.s32 512, 512
      %40 = vsyncadd [#allocation6], %s39
      %s41 = sshll.u32 [#allocation7], 4
      %s42 = int_to_ptr.vmem [resolvable:$true] %s41
      %47 = dma.hbm_to_vmem [thread:$0]  %s2, 512, %s42, [#allocation6], 128, 128, 8
    $region13: #{tpu_custom_call.1} parent=1 // pred_fallthru
      _
    // Predicated region
    $region14: #{tpu_custom_call.1} parent=1 // pred_check
      _
    $region15: #{tpu_custom_call.1} parent=1 // pred_check_branch
      %49 = sbr.rel (0) target = $region17
    $region16: #{tpu_custom_call.1} parent=1 // pred_region
      %s51 = ssub.s32 512, 512
      %52 = vsyncadd [#allocation9], %s51
      %s53 = sshll.u32 [#allocation8], 4
      %s54 = int_to_ptr.vmem [resolvable:$true] %s53
      %59 = dma.hbm_to_vmem [thread:$0]  %s3, 512, %s54, [#allocation9], 128, 128, 8
    $region17: #{tpu_custom_call.1} parent=1 // pred_fallthru
      _
    // Predicated region
    $region18: #{tpu_custom_call.1} parent=1 // pred_check
      _
    $region19: #{tpu_custom_call.1} parent=1 // pred_check_branch
      %61 = sbr.rel (0) target = $region21
    $region20: #{tpu_custom_call.1} parent=1 // pred_region
      _
    $region21: #{tpu_custom_call.1} parent=1 // pred_fallthru
      _
    // Predicated region
    $region22: #{tpu_custom_call.1} parent=1 // pred_check
      _
    $region23: #{tpu_custom_call.1} parent=1 // pred_check_branch
      %63 = sbr.rel (0) target = $region25
    $region24: #{tpu_custom_call.1} parent=1 // pred_region
      %64 = dma.done [#allocation3], 32
    $region25: #{tpu_custom_call.1} parent=1 // pred_fallthru
      _
    // Predicated region
    $region26: #{tpu_custom_call.1} parent=1 // pred_check
      _
    $region27: #{tpu_custom_call.1} parent=1 // pred_check_branch
      %66 = sbr.rel (0) target = $region29
    $region28: #{tpu_custom_call.1} parent=1 // pred_region
      %67 = dma.done [#allocation6], 256
    $region29: #{tpu_custom_call.1} parent=1 // pred_fallthru
      _
    // Predicated region
    $region30: #{tpu_custom_call.1} parent=1 // pred_check
      _
    $region31: #{tpu_custom_call.1} parent=1 // pred_check_branch
      %69 = sbr.rel (0) target = $region33
    $region32: #{tpu_custom_call.1} parent=1 // pred_region
      %70 = dma.done [#allocation6], 512
    $region33: #{tpu_custom_call.1} parent=1 // pred_fallthru
      _
    // Predicated region
    $region34: #{tpu_custom_call.1} parent=1 // pred_check
      _
    $region35: #{tpu_custom_call.1} parent=1 // pred_check_branch
      %72 = sbr.rel (0) target = $region37
    $region36: #{tpu_custom_call.1} parent=1 // pred_region
      %73 = dma.done [#allocation9], 512
    $region37: #{tpu_custom_call.1} parent=1 // pred_fallthru
      _
    %v74 = vld [vmem:[%s4] sm:$0x1]
    %v75 = vld [vmem:[%s4 + $0x1] sm:$0x1]
    %v76 = vld [vmem:[%s4 + $0x2] sm:$0x1]
    %v77 = vld [vmem:[#allocation5] sm:$0xff]
    %v78 = vld [vmem:[#allocation5 + $0x8] sm:$0xff]
    %v79 = vld [vmem:[#allocation2] sm:$0x3]
    %v80 = vld [vmem:[#allocation8] sm:$0xff]
    %v81 = vld [vmem:[#allocation8 + $0x8] sm:$0xff]
    %v82 = vld [vmem:[#allocation8 + $0x10] sm:$0xff]
    %v83 = vld [vmem:[#allocation8 + $0x18] sm:$0xff]
    %v84 = vlaneseq
    %v85 = vshrl.u32 %v84, 7
    %v86 = vsub.s32 0, %v85
    %v87 = vrot.slane %v75, %v86
    %vm88 = vcmask 261120
    %v90 = vsel %vm88, %v79, 0
    %92 = vmatprep.subr.mxu0 0.0
    %93 = vmatpush1.msra.mxu0 %v80
    %94 = vmatprep.subr.mxu0 0.0
    %95 = vmatpush1.msra.mxu0 %v81
    %96 = vmatprep.subr.mxu0 0.0
    %97 = vmatpush1.msra.mxu0 %v82
    %98 = vmatprep.subr.mxu0 0.0
    %99 = vmatpush1.msra.mxu0 %v83
    %100 = vmatprep.subr.mxu0 0.0
    %101 = vmatpush1.msra.mxu0 0.0
    %102 = vmatprep.subr.mxu0 0.0
    %103 = vmatpush1.msra.mxu0 0.0
    %104 = vmatprep.subr.mxu0 0.0
    %105 = vmatpush1.msra.mxu0 0.0
    %106 = vmatprep.subr.mxu0 0.0
    %107 = vmatpush1.msra.mxu0 0.0
    %108 = vmatprep.subr.mxu0 0.0
    %109 = vmatpush1.msra.mxu0 0.0
    %110 = vmatprep.subr.mxu0 0.0
    %111 = vmatpush1.msra.mxu0 0.0
    %112 = vmatprep.subr.mxu0 0.0
    %113 = vmatpush1.msra.mxu0 0.0
    %114 = vmatprep.subr.mxu0 0.0
    %115 = vmatpush1.msra.mxu0 0.0
    %116 = vmatprep.subr.mxu0 0.0
    %117 = vmatpush1.msra.mxu0 0.0
    %118 = vmatprep.subr.mxu0 0.0
    %119 = vmatpush1.msra.mxu0 0.0
    %120 = vmatprep.subr.mxu0 0.0
    %121 = vmatpush1.msra.mxu0 0.0
    %122 = vmatprep.subr.mxu0 0.0
    %123 = vmatpush1.msra.mxu0 0.0
    %124 = vmatprep.subr.mxu0 0.0
    %125 = vmatpush1.msra.mxu0 0.0
    %126 = vmatprep.subr.mxu0 0.0
    %127 = vmatpush1.msra.mxu0 0.0
    %128 = vmatprep.subr.mxu0 0.0
    %129 = vmatpush1.msra.mxu0 0.0
    %130 = vmatprep.subr.mxu0 0.0
    %131 = vmatpush1.msra.mxu0 0.0
    %132 = vmatprep.subr.mxu0 0.0
    %133 = vmatpush1.msra.mxu0 0.0
    %134 = vmatprep.subr.mxu0 0.0
    %135 = vmatpush1.msra.mxu0 0.0
    %136 = vmatprep.subr.mxu0 0.0
    %137 = vmatpush1.msra.mxu0 0.0
    %138 = vmatprep.subr.mxu0 0.0
    %139 = vmatpush1.msra.mxu0 0.0
    %140 = vmatprep.subr.mxu0 0.0
    %141 = vmatpush1.msra.mxu0 0.0
    %142 = vmatprep.subr.mxu0 0.0
    %143 = vmatpush1.msra.mxu0 0.0
    %144 = vmatprep.subr.mxu0 0.0
    %145 = vmatpush1.msra.mxu0 0.0
    %146 = vmatprep.subr.mxu0 0.0
    %147 = vmatpush1.msra.mxu0 0.0
    %148 = vmatprep.subr.mxu0 0.0
    %149 = vmatpush1.msra.mxu0 0.0
    %150 = vmatprep.subr.mxu0 0.0
    %151 = vmatpush1.msra.mxu0 0.0
    %152 = vmatprep.subr.mxu0 0.0
    %153 = vmatpush1.msra.mxu0 0.0
    %154 = vmatprep.subr.mxu0 0.0
    %155 = vmatpush1.msra.mxu0 0.0
    %156 = vmatprep.mubr.f32.mxu0 0.0
    %157 = vmatmul.mubr.f32.gmra.mrb[0].mxu0 %v90
    %v158 = vpop.f32.mrb[0].mxu0
    %v159 = vadd.f32 %v87, %v158
    %v160 = vpop.f32.mrb[0].mxu0
    %161 = vdwg.mxu0
    %v162 = vld [vmem:[#allocation7] sm:$0xff]
    %v163 = vld [vmem:[#allocation7 + $0x8] sm:$0xff]
    %v164 = vld [vmem:[#allocation7 + $0x10] sm:$0xff]
    %v165 = vld [vmem:[#allocation7 + $0x18] sm:$0xff]
    %v166 = vlaneseq
    %v167 = vshrl.u32 %v166, 7
    %v168 = vsub.s32 0, %v167
    %v169 = vrot.slane %v74, %v168
    %v171 = vsel %vm88, %v77, 0
    %v174 = vsel %vm88, %v78, 0
    %176 = vmatprep.subr.mxu0 0.0
    %177 = vmatpush1.msra.mxu0 %v162
    %178 = vmatprep.subr.mxu0 0.0
    %179 = vmatpush1.msra.mxu0 %v163
    %180 = vmatprep.subr.mxu0 0.0
    %181 = vmatpush1.msra.mxu0 %v164
    %182 = vmatprep.subr.mxu0 0.0
    %183 = vmatpush1.msra.mxu0 %v165
    %184 = vmatprep.subr.mxu0 0.0
    %185 = vmatpush1.msra.mxu0 0.0
    %186 = vmatprep.subr.mxu0 0.0
    %187 = vmatpush1.msra.mxu0 0.0
    %188 = vmatprep.subr.mxu0 0.0
    %189 = vmatpush1.msra.mxu0 0.0
    %190 = vmatprep.subr.mxu0 0.0
    %191 = vmatpush1.msra.mxu0 0.0
    %192 = vmatprep.subr.mxu0 0.0
    %193 = vmatpush1.msra.mxu0 0.0
    %194 = vmatprep.subr.mxu0 0.0
    %195 = vmatpush1.msra.mxu0 0.0
    %196 = vmatprep.subr.mxu0 0.0
    %197 = vmatpush1.msra.mxu0 0.0
    %198 = vmatprep.subr.mxu0 0.0
    %199 = vmatpush1.msra.mxu0 0.0
    %200 = vmatprep.subr.mxu0 0.0
    %201 = vmatpush1.msra.mxu0 0.0
    %202 = vmatprep.subr.mxu0 0.0
    %203 = vmatpush1.msra.mxu0 0.0
    %204 = vmatprep.subr.mxu0 0.0
    %205 = vmatpush1.msra.mxu0 0.0
    %206 = vmatprep.subr.mxu0 0.0
    %207 = vmatpush1.msra.mxu0 0.0
    %208 = vmatprep.subr.mxu0 0.0
    %209 = vmatpush1.msra.mxu0 0.0
    %210 = vmatprep.subr.mxu0 0.0
    %211 = vmatpush1.msra.mxu0 0.0
    %212 = vmatprep.subr.mxu0 0.0
    %213 = vmatpush1.msra.mxu0 0.0
    %214 = vmatprep.subr.mxu0 0.0
    %215 = vmatpush1.msra.mxu0 0.0
    %216 = vmatprep.subr.mxu0 0.0
    %217 = vmatpush1.msra.mxu0 0.0
    %218 = vmatprep.subr.mxu0 0.0
    %219 = vmatpush1.msra.mxu0 0.0
    %220 = vmatprep.subr.mxu0 0.0
    %221 = vmatpush1.msra.mxu0 0.0
    %222 = vmatprep.subr.mxu0 0.0
    %223 = vmatpush1.msra.mxu0 0.0
    %224 = vmatprep.subr.mxu0 0.0
    %225 = vmatpush1.msra.mxu0 0.0
    %226 = vmatprep.subr.mxu0 0.0
    %227 = vmatpush1.msra.mxu0 0.0
    %228 = vmatprep.subr.mxu0 0.0
    %229 = vmatpush1.msra.mxu0 0.0
    %230 = vmatprep.subr.mxu0 0.0
    %231 = vmatpush1.msra.mxu0 0.0
    %232 = vmatprep.subr.mxu0 0.0
    %233 = vmatpush1.msra.mxu0 0.0
    %234 = vmatprep.subr.mxu0 0.0
    %235 = vmatpush1.msra.mxu0 0.0
    %236 = vmatprep.subr.mxu0 0.0
    %237 = vmatpush1.msra.mxu0 0.0
    %238 = vmatprep.subr.mxu0 0.0
    %239 = vmatpush1.msra.mxu0 0.0
    %240 = vmatprep.mubr.f32.mxu0 0.0
    %241 = vmatmul.mubr.f32.gmra.mrb[0].mxu0 %v171
    %v242 = vpop.f32.mrb[0].mxu0
    %v243 = vadd.f32 %v169, %v242
    %v244 = vpop.f32.mrb[0].mxu0
    %245 = vmatprep.mubr.f32.mxu0 0.0
    %246 = vmatmul.mubr.f32.gmra.mrb[0].mxu0 %v174
    %v247 = vpop.f32.mrb[0].mxu0
    %v248 = vadd.f32 %v169, %v247
    %v249 = vpop.f32.mrb[0].mxu0
    %250 = vdwg.mxu0
    %v253 = vunpack.c.l.s4 1966171168
    %v254 = vunpack.c.0.s8 %v253
    %v255 = vlaneseq
    %v256 = vshrl.u32 %v255, 7
    %v257 = vsub.s32 %v254, %v256
    %v258 = vrot.slane %v159, %v257
    %v259 = vcombine.high %v258, %v258
    %v261 = vunpack.c.l.s4 1966171168
    %v262 = vunpack.c.0.s8 %v261
    %v263 = vlaneseq
    %v264 = vshrl.u32 %v263, 7
    %v265 = vsub.s32 %v262, %v264
    %v266 = vrot.slane %v258, %v265
    %v268 = vunpack.c.l.s4 1966171168
    %v269 = vunpack.c.0.s8 %v268
    %v270 = vlaneseq
    %v271 = vshrl.u32 %v270, 7
    %v272 = vsub.s32 %v269, %v271
    %v273 = vrot.slane %v259, %v272
    %v274 = vlaneseq
    %v275 = vshrl.u32 %v274, 7
    %v276 = vsub.s32 0, %v275
    %v277 = vrot.slane %v266, %v276
    %v278 = vlaneseq
    %v279 = vshrl.u32 %v278, 7
    %v280 = vsub.s32 0, %v279
    %v281 = vrot.slane %v273, %v280
    %v284 = vadd.f32 %v243, %v277
    %v285 = vadd.f32 %v248, %v281
    %v286 = vtanh.pop %v284
    %v287 = vtanh.pop %v285
    %v288 = vlaneseq
    %v289 = vshrl.u32 %v288, 7
    %v290 = vsub.s32 0, %v289
    %v291 = vrot.slane %v76, %v290
    %v292 = vmul.f32 %v286, %v291
    %v293 = vmul.f32 %v287, %v291
    %v294 = vsel %vm88, %v292, 0.0
    %295 = vadd.xlane.f32.xlu0 %v294
    %v296 = vpop.xlane.xlu0 %295
    %v297 = vsel %vm88, %v293, 0.0
    %298 = vadd.xlane.f32.xlu0 %v297
    %v299 = vpop.xlane.xlu0 %298
    %v302 = vlaneseq
    %v303 = vand.u32 %v302, 127
    %v304 = vlaneseq
    %v305 = vshrl.u32 %v304, 7
    %v306 = vsub.s32 %v303, %v305
    %v307 = vrot.slane %v296, %v306
    %v308 = vlaneseq
    %v309 = vshrl.u32 %v308, 7
    %v310 = vsub.s32 %v303, %v309
    %v311 = vrot.slane %v299, %v310
    %vm312 = vcmask 1041409
    %v313 = vsel %vm312, %v311, %v307
    %vm315 = vcmask 58368
    %v316 = vsel %vm315, %v313, -inf
    %317 = vmax.xlane.f32.xlu0 %v316
    %v318 = vpop.xlane.xlu0 %317
    %v320 = vlaneseq
    %v321 = vshrl.u32 %v320, 7
    %v322 = vsub.s32 0, %v321
    %v323 = vrot.slane %v318, %v322
    %v324 = vlaneseq
    %v325 = vshrl.u32 %v324, 7
    %v326 = vsub.s32 1, %v325
    %v327 = vrot.slane %v318, %v326
    %v330 = vsub.f32 %v296, %v323
    %v331 = vsub.f32 %v299, %v327
    %v332 = vmul.f32 %v330, 1.442695
    %v333 = vpow.pop %v332
    %v334 = vmul.f32 %v331, 1.442695
    %v335 = vpow.pop %v334
    %338 = vset.pattern.permute.xlu0 0
    %339 = vperm.xlu0 %338, %v333
    %v340 = vpop.permute.xlu0 %339
    %341 = vset.pattern.permute.xlu0 0
    %342 = vperm.xlu0 %341, %v335
    %v343 = vpop.permute.xlu0 %342
    %v344 = vlaneseq
    %v345 = vshrl.u32 %v344, 7
    %v346 = vsub.s32 %v303, %v345
    %v347 = vrot.slane %v340, %v346
    %v348 = vlaneseq
    %v349 = vshrl.u32 %v348, 7
    %v350 = vsub.s32 %v303, %v349
    %v351 = vrot.slane %v343, %v350
    %v352 = vsel %vm312, %v351, %v347
    %v354 = vsel %vm315, %v352, 0.0
    %355 = vadd.xlane.f32.xlu0 %v354
    %v356 = vpop.xlane.xlu0 %355
    %v358 = vlaneseq
    %v359 = vshrl.u32 %v358, 7
    %v360 = vsub.s32 0, %v359
    %v361 = vrot.slane %v356, %v360
    %v362 = vlaneseq
    %v363 = vshrl.u32 %v362, 7
    %v364 = vsub.s32 1, %v363
    %v365 = vrot.slane %v356, %v364
    %v368 = vrcp.pop %v361
    %v369 = vmul.f32 %v333, %v368
    %v370 = vrcp.pop %v365
    %v371 = vmul.f32 %v335, %v370
    %v372 = vlaneseq
    %v373 = vshrl.u32 %v372, 7
    %v374 = vmul.u32 %v373, 8
    %vm375 = vcmp.ge.s32.totalorder %v303, %v374
    %v376 = vadd.s32 %v374, 8
    %vm377 = vcmp.lt.s32.totalorder %v303, %v376
    %vm378 = vmand %vm375, %vm377
    %381 = vset.pattern.permute.xlu0 0
    %382 = vperm.xlu0 %381, %v369
    %v383 = vpop.permute.xlu0 %382
    %384 = vset.pattern.permute.xlu0 0
    %385 = vperm.xlu0 %384, %v371
    %v386 = vpop.permute.xlu0 %385
    %v387 = vlaneseq
    %v388 = vshrl.u32 %v387, 7
    %v389 = vsub.s32 %v303, %v388
    %v390 = vrot.slane %v383, %v389
    %v391 = vlaneseq
    %v392 = vshrl.u32 %v391, 7
    %v393 = vsub.s32 %v303, %v392
    %v394 = vrot.slane %v386, %v393
    %v395 = vsel %vm312, %v394, %v390
    %v397 = vadd.s32 %v303, 4294967288
    %v398 = vlaneseq
    %v399 = vshrl.u32 %v398, 7
    %v400 = vsub.s32 %v397, %v399
    %v401 = vrot.slane %v383, %v400
    %v402 = vlaneseq
    %v403 = vshrl.u32 %v402, 7
    %v404 = vsub.s32 %v397, %v403
    %v405 = vrot.slane %v386, %v404
    %v406 = vsel %vm312, %v405, %v401
    %vm408 = vcmask 64512
    %v409 = vsel %vm408, %v395, %v406
    %v410 = vsel %vm378, %v409, 0.0
    %vm411 = vcmask 130048
    %v413 = vsel %vm411, %v410, 0
    %415 = vmatprep.subr.mxu0 0.0
    %416 = vmatpush1.msra.mxu0 %v77
    %417 = vmatprep.subr.mxu0 0.0
    %418 = vmatpush1.msra.mxu0 %v78
    %419 = vmatprep.subr.mxu0 0.0
    %420 = vmatpush1.msra.mxu0 0.0
    %421 = vmatprep.subr.mxu0 0.0
    %422 = vmatpush1.msra.mxu0 0.0
    %423 = vmatprep.subr.mxu0 0.0
    %424 = vmatpush1.msra.mxu0 0.0
    %425 = vmatprep.subr.mxu0 0.0
    %426 = vmatpush1.msra.mxu0 0.0
    %427 = vmatprep.subr.mxu0 0.0
    %428 = vmatpush1.msra.mxu0 0.0
    %429 = vmatprep.subr.mxu0 0.0
    %430 = vmatpush1.msra.mxu0 0.0
    %431 = vmatprep.subr.mxu0 0.0
    %432 = vmatpush1.msra.mxu0 0.0
    %433 = vmatprep.subr.mxu0 0.0
    %434 = vmatpush1.msra.mxu0 0.0
    %435 = vmatprep.subr.mxu0 0.0
    %436 = vmatpush1.msra.mxu0 0.0
    %437 = vmatprep.subr.mxu0 0.0
    %438 = vmatpush1.msra.mxu0 0.0
    %439 = vmatprep.subr.mxu0 0.0
    %440 = vmatpush1.msra.mxu0 0.0
    %441 = vmatprep.subr.mxu0 0.0
    %442 = vmatpush1.msra.mxu0 0.0
    %443 = vmatprep.subr.mxu0 0.0
    %444 = vmatpush1.msra.mxu0 0.0
    %445 = vmatprep.subr.mxu0 0.0
    %446 = vmatpush1.msra.mxu0 0.0
    %447 = vmatprep.subr.mxu0 0.0
    %448 = vmatpush1.msra.mxu0 0.0
    %449 = vmatprep.subr.mxu0 0.0
    %450 = vmatpush1.msra.mxu0 0.0
    %451 = vmatprep.subr.mxu0 0.0
    %452 = vmatpush1.msra.mxu0 0.0
    %453 = vmatprep.subr.mxu0 0.0
    %454 = vmatpush1.msra.mxu0 0.0
    %455 = vmatprep.subr.mxu0 0.0
    %456 = vmatpush1.msra.mxu0 0.0
    %457 = vmatprep.subr.mxu0 0.0
    %458 = vmatpush1.msra.mxu0 0.0
    %459 = vmatprep.subr.mxu0 0.0
    %460 = vmatpush1.msra.mxu0 0.0
    %461 = vmatprep.subr.mxu0 0.0
    %462 = vmatpush1.msra.mxu0 0.0
    %463 = vmatprep.subr.mxu0 0.0
    %464 = vmatpush1.msra.mxu0 0.0
    %465 = vmatprep.subr.mxu0 0.0
    %466 = vmatpush1.msra.mxu0 0.0
    %467 = vmatprep.subr.mxu0 0.0
    %468 = vmatpush1.msra.mxu0 0.0
    %469 = vmatprep.subr.mxu0 0.0
    %470 = vmatpush1.msra.mxu0 0.0
    %471 = vmatprep.subr.mxu0 0.0
    %472 = vmatpush1.msra.mxu0 0.0
    %473 = vmatprep.subr.mxu0 0.0
    %474 = vmatpush1.msra.mxu0 0.0
    %475 = vmatprep.subr.mxu0 0.0
    %476 = vmatpush1.msra.mxu0 0.0
    %477 = vmatprep.subr.mxu0 0.0
    %478 = vmatpush1.msra.mxu0 0.0
    %479 = vmatprep.mubr.f32.mxu0 0.0
    %480 = vmatmul.mubr.f32.gmra.mrb[0].mxu0 %v413
    %v481 = vpop.f32.mrb[0].mxu0
    %v482 = vadd.f32 0.0, %v481
    %v483 = vpop.f32.mrb[0].mxu0
    %484 = vdwg.mxu0
    %vm485 = vcmask 254976
    %486 = vst.msk [vmem:[#allocation10] sm:$0x3] %vm485, %v482
    // Predicated region
    $region38: #{tpu_custom_call.1} parent=1 // pred_check
      _
    $region39: #{tpu_custom_call.1} parent=1 // pred_check_branch
      %488 = sbr.rel (0) target = $region41
    $region40: #{tpu_custom_call.1} parent=1 // pred_region
      %s490 = ssub.s32 32, 32
      %491 = vsyncadd [#allocation4], %s490
      %s493 = sshll.u32 [#allocation10], 4
      %s494 = int_to_ptr.vmem [resolvable:$true] %s493
      %496 = dma.vmem_to_hbm [thread:$0]  %s494, 32, %s5, [#allocation4]
    $region41: #{tpu_custom_call.1} parent=1 // pred_fallthru
      _
    // Predicated region
    $region42: #{tpu_custom_call.1} parent=1 // pred_check
      _
    $region43: #{tpu_custom_call.1} parent=1 // pred_check_branch
      %498 = sbr.rel (0) target = $region45
    $region44: #{tpu_custom_call.1} parent=1 // pred_region
      %499 = dma.done [#allocation4], 32
    $region45: #{tpu_custom_call.1} parent=1 // pred_fallthru
      _
    %500 = vsyncpa [#allocation3], 1
    %501 = vsyncpa [#allocation6], 1
    %502 = vsyncpa [#allocation9], 1
    %503 = vsyncpa [#allocation4], 1

</llo_original>
